<compile_context>
chip_gen: v7x
topology: tpu7x:2x2x1
jax: 0.10.0
libtpu: 0.0.40
codegen_flags: <defaults>
</compile_context>

<pallas_src>
import functools

import jax
import jax.numpy as jnp
from jax.experimental import pallas as pl
from jax.experimental.pallas import tpu as pltpu

POOL_KH = 7  # fixed pooling kernel height from the PyTorch forward()


def _make_divisible(value, divisor=8, min_value=None, min_ratio=0.9):
    if min_value is None:
        min_value = divisor
    new_value = max(min_value, int(value + divisor / 2) // divisor * divisor)
    if new_value < min_ratio * value:
        new_value += divisor
    return new_value


def _build_pool_matrices(H, W):
    """A: (H*W, Hp) averaging matrix; E: (Hp, H*W) one-hot expansion matrix."""
    Hp = -(-H // POOL_KH)
    h_idx = jnp.arange(H, dtype=jnp.int32) // POOL_KH                  # (H,)
    p_idx = jnp.arange(Hp, dtype=jnp.int32)                            # (Hp,)
    onehot = (h_idx[:, None] == p_idx[None, :]).astype(jnp.float32)    # (H, Hp)
    counts = jnp.minimum((p_idx + 1) * POOL_KH, H) - p_idx * POOL_KH   # rows in window
    inv = 1.0 / (counts.astype(jnp.float32) * float(W))                # (Hp,)
    a_rows = onehot * inv[None, :]                                     # (H, Hp)
    A = jnp.broadcast_to(a_rows[:, None, :], (H, W, Hp)).reshape(H * W, Hp)
    E = jnp.broadcast_to(onehot.T[:, :, None], (Hp, H, W)).reshape(Hp, H * W)
    return A, E


def _se_kernel(x_ref, a_ref, e_ref, w1_ref, b1_ref, w2_ref, b2_ref, o_ref, *, nb):
    # Hoist the small constant operands out of the per-image loop.
    A = a_ref[...]                      # (HW, Hp) f32
    E = e_ref[...]                      # (Hp, HW) f32
    w1 = w1_ref[...]                    # (mid, C)
    b1 = b1_ref[...]                    # (mid, 1)
    w2 = w2_ref[...]                    # (C, mid)
    b2 = b2_ref[...]                    # (C, 1)

    for b in range(nb):                 # small static unroll over images in the block
        xb = x_ref[b].astype(jnp.float32)                                   # (C, HW)

        # Squeeze: AvgPool2d((7, W), ceil_mode=True) as one MXU matmul.
        pooled = jnp.dot(xb, A, preferred_element_type=jnp.float32)         # (C, Hp)

        # Excitation: 1x1 conv -> ReLU -> 1x1 conv -> HSigmoid(bias=3, div=6).
        y1 = jnp.maximum(
            jnp.dot(w1, pooled, preferred_element_type=jnp.float32) + b1, 0.0)  # (mid, Hp)
        y2 = jnp.dot(w2, y1, preferred_element_type=jnp.float32) + b2            # (C, Hp)
        scale = jnp.clip((y2 + 3.0) / 6.0, 0.0, 1.0)                             # (C, Hp)

        # repeat_interleave(.,7)[:H] as one MXU matmul -> lane-dense (C, HW),
        # then a pure-VPU elementwise multiply (no cross-lane broadcast).
        rowscale = jnp.dot(scale, E, preferred_element_type=jnp.float32)     # (C, HW)
        o_ref[b] = (xb * rowscale).astype(o_ref.dtype)


def se_layer(x, w1, b1, w2, b2, *, block_batch=None):
    N, C, H, W = x.shape
    mid = w1.shape[0]
    HW = H * W
    Hp = -(-H // POOL_KH)

    A, E = _build_pool_matrices(H, W)
    x_flat = x.reshape(N, C, HW)        # contiguous merge of (H, W): free

    if block_batch is None:
        # Batch several images per block to amortize per-step pipeline
        # overhead; cap block bytes so double-buffered in+out blocks plus
        # f32 temporaries stay well within VMEM on every TPU generation.
        bytes_per_image = C * HW * x.dtype.itemsize
        target_block_bytes = 2 * 1024 * 1024
        block_batch = max(1, min(N, target_block_bytes // max(bytes_per_image, 1), 8))
    nb = int(block_batch)

    kernel = functools.partial(_se_kernel, nb=nb)
    out_flat = pl.pallas_call(
        kernel,
        out_shape=jax.ShapeDtypeStruct((N, C, HW), x.dtype),
        grid_spec=pltpu.PrefetchScalarGridSpec(
            num_scalar_prefetch=0,
            grid=(pl.cdiv(N, nb),),
            in_specs=[
                pl.BlockSpec((nb, C, HW), lambda i: (i, 0, 0)),   # x (flat spatial)
                pl.BlockSpec((HW, Hp), lambda i: (0, 0)),         # pooling matrix A
                pl.BlockSpec((Hp, HW), lambda i: (0, 0)),         # expansion matrix E
                pl.BlockSpec((mid, C), lambda i: (0, 0)),         # conv1 weight
                pl.BlockSpec((mid, 1), lambda i: (0, 0)),         # conv1 bias
                pl.BlockSpec((C, mid), lambda i: (0, 0)),         # conv2 weight
                pl.BlockSpec((C, 1), lambda i: (0, 0)),           # conv2 bias
            ],
            out_specs=pl.BlockSpec((nb, C, HW), lambda i: (i, 0, 0)),
        ),
        compiler_params=pltpu.CompilerParams(
            dimension_semantics=("parallel",),        # batch blocks are independent
            vmem_limit_bytes=32 * 1024 * 1024,
        ),
    )(x_flat, A, E, w1, b1, w2, b2)
    return out_flat.reshape(N, C, H, W)


def se_ref(x, w1, b1, w2, b2):
    """Pure-JAX reference of the PyTorch forward."""
    N, C, H, W = x.shape
    Hp = -(-H // POOL_KH)
    cols = []
    for p in range(Hp):
        r0, r1 = p * POOL_KH, min(p * POOL_KH + POOL_KH, H)
        cols.append(jnp.mean(x[:, :, r0:r1, :], axis=(2, 3)))
    pooled = jnp.stack(cols, axis=2)                                  # (N, C, Hp)
    y1 = jnp.maximum(jnp.einsum('mc,ncp->nmp', w1, pooled) + b1[None], 0.0)
    y2 = jnp.einsum('cm,nmp->ncp', w2, y1) + b2[None]
    scale = jnp.clip((y2 + 3.0) / 6.0, 0.0, 1.0)                      # (N, C, Hp)
    scale_full = jnp.repeat(scale, POOL_KH, axis=2)[:, :, :H]
    return x * scale_full[:, :, :, None]


if __name__ == "__main__":
    N, C, H, W = 2, 32, 16, 16
    ratio = 16
    mid = _make_divisible(C // ratio, 8)   # -> 8

    key = jax.random.PRNGKey(0)
    k1, k2, k3, k4, k5 = jax.random.split(key, 5)
    x = jax.random.normal(k1, (N, C, H, W), jnp.float32)
    w1 = jax.random.normal(k2, (mid, C), jnp.float32) * 0.1
    b1 = jax.random.normal(k3, (mid, 1), jnp.float32) * 0.1
    w2 = jax.random.normal(k4, (C, mid), jnp.float32) * 0.1
    b2 = jax.random.normal(k5, (C, 1), jnp.float32) * 0.1

    out = se_layer(x, w1, b1, w2, b2)
    jax.block_until_ready(out)

    ref = se_ref(x, w1, b1, w2, b2)
    assert out.shape == (N, C, H, W)
    err = float(jnp.max(jnp.abs(out - ref)))
    assert jnp.allclose(out, ref, atol=1e-3, rtol=1e-3), err

    # bf16 I/O path (halves HBM traffic for bf16 models; compute stays f32).
    out_bf16 = se_layer(x.astype(jnp.bfloat16), w1, b1, w2, b2)
    jax.block_until_ready(out_bf16)
    assert out_bf16.dtype == jnp.bfloat16
    err_bf16 = float(jnp.max(jnp.abs(out_bf16.astype(jnp.float32) - ref)))
    assert err_bf16 < 1e-1, err_bf16

    print("KERNEL_OK")
</pallas_src>

<mosaic_0001>
module attributes {stable_mosaic.version = 11 : i64} {
  func.func @_se_kernel(%arg0: i32, %arg1: memref<2x32x256xf32, #tpu.memory_space<vmem>>, %arg2: memref<256x3xf32, #tpu.memory_space<vmem>>, %arg3: memref<3x256xf32, #tpu.memory_space<vmem>>, %arg4: memref<8x32xf32, #tpu.memory_space<vmem>>, %arg5: memref<8x1xf32, #tpu.memory_space<vmem>>, %arg6: memref<32x8xf32, #tpu.memory_space<vmem>>, %arg7: memref<32x1xf32, #tpu.memory_space<vmem>>, %arg8: memref<2x32x256xf32, #tpu.memory_space<vmem>>) attributes {dimension_semantics = [#tpu.dimension_semantics<parallel>], iteration_bounds = array<i64: 1>, scalar_prefetch = 0 : i64, scratch_operands = 0 : i64, tpu.core_type = #tpu.core_type<tc>, window_params = [{transform_indices = @transform_0, window_bounds = array<i64: 2, 32, 256>}, {pipeline_mode = #tpu.pipeline_mode<synchronous>, transform_indices = @transform_1, window_bounds = array<i64: 256, 3>}, {pipeline_mode = #tpu.pipeline_mode<synchronous>, transform_indices = @transform_2, window_bounds = array<i64: 3, 256>}, {pipeline_mode = #tpu.pipeline_mode<synchronous>, transform_indices = @transform_3, window_bounds = array<i64: 8, 32>}, {pipeline_mode = #tpu.pipeline_mode<synchronous>, transform_indices = @transform_4, window_bounds = array<i64: 8, 1>}, {pipeline_mode = #tpu.pipeline_mode<synchronous>, transform_indices = @transform_5, window_bounds = array<i64: 32, 8>}, {pipeline_mode = #tpu.pipeline_mode<synchronous>, transform_indices = @transform_6, window_bounds = array<i64: 32, 1>}, {transform_indices = @transform_7, window_bounds = array<i64: 2, 32, 256>}]} {
    %c0 = arith.constant 0 : index
    %c0_0 = arith.constant 0 : index
    %0 = vector.load %arg2[%c0, %c0_0] : memref<256x3xf32, #tpu.memory_space<vmem>>, vector<256x3xf32>
    %c0_1 = arith.constant 0 : index
    %c0_2 = arith.constant 0 : index
    %1 = vector.load %arg3[%c0_1, %c0_2] : memref<3x256xf32, #tpu.memory_space<vmem>>, vector<3x256xf32>
    %c0_3 = arith.constant 0 : index
    %c0_4 = arith.constant 0 : index
    %2 = vector.load %arg4[%c0_3, %c0_4] : memref<8x32xf32, #tpu.memory_space<vmem>>, vector<8x32xf32>
    %c0_5 = arith.constant 0 : index
    %c0_6 = arith.constant 0 : index
    %3 = vector.load %arg5[%c0_5, %c0_6] : memref<8x1xf32, #tpu.memory_space<vmem>>, vector<8x1xf32>
    %c0_7 = arith.constant 0 : index
    %c0_8 = arith.constant 0 : index
    %4 = vector.load %arg6[%c0_7, %c0_8] : memref<32x8xf32, #tpu.memory_space<vmem>>, vector<32x8xf32>
    %c0_9 = arith.constant 0 : index
    %c0_10 = arith.constant 0 : index
    %5 = vector.load %arg7[%c0_9, %c0_10] : memref<32x1xf32, #tpu.memory_space<vmem>>, vector<32x1xf32>
    %c0_11 = arith.constant 0 : index
    %c0_12 = arith.constant 0 : index
    %c0_13 = arith.constant 0 : index
    %6 = vector.load %arg1[%c0_11, %c0_12, %c0_13] : memref<2x32x256xf32, #tpu.memory_space<vmem>>, vector<1x32x256xf32>
    %7 = vector.shape_cast %6 : vector<1x32x256xf32> to vector<32x256xf32>
    %cst = arith.constant dense<0.000000e+00> : vector<32x3xf32>
    %8 = tpu.matmul %7, %0, %cst {dimension_numbers = #tpu.dot_dimension_numbers<[1], [0], [0], [1], [0, 0, 1, 1], [], []>} : vector<32x256xf32>, vector<256x3xf32>, vector<32x3xf32> -> vector<32x3xf32>
    %cst_14 = arith.constant dense<0.000000e+00> : vector<8x3xf32>
    %9 = tpu.matmul %2, %8, %cst_14 {dimension_numbers = #tpu.dot_dimension_numbers<[1], [0], [0], [1], [0, 0, 1, 1], [], []>} : vector<8x32xf32>, vector<32x3xf32>, vector<8x3xf32> -> vector<8x3xf32>
    %10 = vector.broadcast %3 : vector<8x1xf32> to vector<8x3xf32>
    %11 = arith.addf %9, %10 : vector<8x3xf32>
    %cst_15 = arith.constant 0.000000e+00 : f32
    %12 = vector.broadcast %cst_15 : f32 to vector<8x3xf32>
    %13 = arith.maximumf %11, %12 : vector<8x3xf32>
    %cst_16 = arith.constant dense<0.000000e+00> : vector<32x3xf32>
    %14 = tpu.matmul %4, %13, %cst_16 {dimension_numbers = #tpu.dot_dimension_numbers<[1], [0], [0], [1], [0, 0, 1, 1], [], []>} : vector<32x8xf32>, vector<8x3xf32>, vector<32x3xf32> -> vector<32x3xf32>
    %15 = vector.broadcast %5 : vector<32x1xf32> to vector<32x3xf32>
    %16 = arith.addf %14, %15 : vector<32x3xf32>
    %cst_17 = arith.constant 3.000000e+00 : f32
    %17 = vector.broadcast %cst_17 : f32 to vector<32x3xf32>
    %18 = arith.addf %16, %17 : vector<32x3xf32>
    %cst_18 = arith.constant 6.000000e+00 : f32
    %19 = vector.broadcast %cst_18 : f32 to vector<32x3xf32>
    %20 = arith.divf %18, %19 : vector<32x3xf32>
    %cst_19 = arith.constant 0.000000e+00 : f32
    %cst_20 = arith.constant 1.000000e+00 : f32
    %21 = vector.broadcast %cst_19 : f32 to vector<32x3xf32>
    %22 = arith.maximumf %21, %20 : vector<32x3xf32>
    %23 = vector.broadcast %cst_20 : f32 to vector<32x3xf32>
    %24 = arith.minimumf %23, %22 : vector<32x3xf32>
    %cst_21 = arith.constant dense<0.000000e+00> : vector<32x256xf32>
    %25 = tpu.matmul %24, %1, %cst_21 {dimension_numbers = #tpu.dot_dimension_numbers<[1], [0], [0], [1], [0, 0, 1, 1], [], []>} : vector<32x3xf32>, vector<3x256xf32>, vector<32x256xf32> -> vector<32x256xf32>
    %26 = arith.mulf %7, %25 : vector<32x256xf32>
    %c0_22 = arith.constant 0 : index
    %c0_23 = arith.constant 0 : index
    %c0_24 = arith.constant 0 : index
    %27 = vector.load %arg8[%c0_22, %c0_23, %c0_24] : memref<2x32x256xf32, #tpu.memory_space<vmem>>, vector<1x32x256xf32>
    %28 = vector.shape_cast %27 : vector<1x32x256xf32> to vector<32x256xf32>
    %29 = vector.shape_cast %26 : vector<32x256xf32> to vector<1x32x256xf32>
    tpu.vector_store %arg8[%c0_22, %c0_23, %c0_24], %29 {strides = array<i32>} : memref<2x32x256xf32, #tpu.memory_space<vmem>>, vector<1x32x256xf32>,
    %c1 = arith.constant 1 : index
    %c0_25 = arith.constant 0 : index
    %c0_26 = arith.constant 0 : index
    %30 = vector.load %arg1[%c1, %c0_25, %c0_26] : memref<2x32x256xf32, #tpu.memory_space<vmem>>, vector<1x32x256xf32>
    %31 = vector.shape_cast %30 : vector<1x32x256xf32> to vector<32x256xf32>
    %cst_27 = arith.constant dense<0.000000e+00> : vector<32x3xf32>
    %32 = tpu.matmul %31, %0, %cst_27 {dimension_numbers = #tpu.dot_dimension_numbers<[1], [0], [0], [1], [0, 0, 1, 1], [], []>} : vector<32x256xf32>, vector<256x3xf32>, vector<32x3xf32> -> vector<32x3xf32>
    %cst_28 = arith.constant dense<0.000000e+00> : vector<8x3xf32>
    %33 = tpu.matmul %2, %32, %cst_28 {dimension_numbers = #tpu.dot_dimension_numbers<[1], [0], [0], [1], [0, 0, 1, 1], [], []>} : vector<8x32xf32>, vector<32x3xf32>, vector<8x3xf32> -> vector<8x3xf32>
    %34 = vector.broadcast %3 : vector<8x1xf32> to vector<8x3xf32>
    %35 = arith.addf %33, %34 : vector<8x3xf32>
    %cst_29 = arith.constant 0.000000e+00 : f32
    %36 = vector.broadcast %cst_29 : f32 to vector<8x3xf32>
    %37 = arith.maximumf %35, %36 : vector<8x3xf32>
    %cst_30 = arith.constant dense<0.000000e+00> : vector<32x3xf32>
    %38 = tpu.matmul %4, %37, %cst_30 {dimension_numbers = #tpu.dot_dimension_numbers<[1], [0], [0], [1], [0, 0, 1, 1], [], []>} : vector<32x8xf32>, vector<8x3xf32>, vector<32x3xf32> -> vector<32x3xf32>
    %39 = vector.broadcast %5 : vector<32x1xf32> to vector<32x3xf32>
    %40 = arith.addf %38, %39 : vector<32x3xf32>
    %cst_31 = arith.constant 3.000000e+00 : f32
    %41 = vector.broadcast %cst_31 : f32 to vector<32x3xf32>
    %42 = arith.addf %40, %41 : vector<32x3xf32>
    %cst_32 = arith.constant 6.000000e+00 : f32
    %43 = vector.broadcast %cst_32 : f32 to vector<32x3xf32>
    %44 = arith.divf %42, %43 : vector<32x3xf32>
    %cst_33 = arith.constant 0.000000e+00 : f32
    %cst_34 = arith.constant 1.000000e+00 : f32
    %45 = vector.broadcast %cst_33 : f32 to vector<32x3xf32>
    %46 = arith.maximumf %45, %44 : vector<32x3xf32>
    %47 = vector.broadcast %cst_34 : f32 to vector<32x3xf32>
    %48 = arith.minimumf %47, %46 : vector<32x3xf32>
    %cst_35 = arith.constant dense<0.000000e+00> : vector<32x256xf32>
    %49 = tpu.matmul %48, %1, %cst_35 {dimension_numbers = #tpu.dot_dimension_numbers<[1], [0], [0], [1], [0, 0, 1, 1], [], []>} : vector<32x3xf32>, vector<3x256xf32>, vector<32x256xf32> -> vector<32x256xf32>
    %50 = arith.mulf %31, %49 : vector<32x256xf32>
    %c1_36 = arith.constant 1 : index
    %c0_37 = arith.constant 0 : index
    %c0_38 = arith.constant 0 : index
    %51 = vector.load %arg8[%c1_36, %c0_37, %c0_38] : memref<2x32x256xf32, #tpu.memory_space<vmem>>, vector<1x32x256xf32>
    %52 = vector.shape_cast %51 : vector<1x32x256xf32> to vector<32x256xf32>
    %53 = vector.shape_cast %50 : vector<32x256xf32> to vector<1x32x256xf32>
    tpu.vector_store %arg8[%c1_36, %c0_37, %c0_38], %53 {strides = array<i32>} : memref<2x32x256xf32, #tpu.memory_space<vmem>>, vector<1x32x256xf32>,
    return
  }
  func.func @transform_0(%arg0: i32) -> (i32, i32, i32) {
    %c0_i32 = arith.constant 0 : i32
    %c0_i32_0 = arith.constant 0 : i32
    %c0_i32_1 = arith.constant 0 : i32
    return %arg0, %c0_i32, %c0_i32_0 : i32, i32, i32
  }
  func.func @transform_1(%arg0: i32) -> (i32, i32) {
    %c0_i32 = arith.constant 0 : i32
    %c0_i32_0 = arith.constant 0 : i32
    %c0_i32_1 = arith.constant 0 : i32
    return %c0_i32, %c0_i32_0 : i32, i32
  }
  func.func @transform_2(%arg0: i32) -> (i32, i32) {
    %c0_i32 = arith.constant 0 : i32
    %c0_i32_0 = arith.constant 0 : i32
    %c0_i32_1 = arith.constant 0 : i32
    return %c0_i32, %c0_i32_0 : i32, i32
  }
  func.func @transform_3(%arg0: i32) -> (i32, i32) {
    %c0_i32 = arith.constant 0 : i32
    %c0_i32_0 = arith.constant 0 : i32
    %c0_i32_1 = arith.constant 0 : i32
    return %c0_i32, %c0_i32_0 : i32, i32
  }
  func.func @transform_4(%arg0: i32) -> (i32, i32) {
    %c0_i32 = arith.constant 0 : i32
    %c0_i32_0 = arith.constant 0 : i32
    %c0_i32_1 = arith.constant 0 : i32
    return %c0_i32, %c0_i32_0 : i32, i32
  }
  func.func @transform_5(%arg0: i32) -> (i32, i32) {
    %c0_i32 = arith.constant 0 : i32
    %c0_i32_0 = arith.constant 0 : i32
    %c0_i32_1 = arith.constant 0 : i32
    return %c0_i32, %c0_i32_0 : i32, i32
  }
  func.func @transform_6(%arg0: i32) -> (i32, i32) {
    %c0_i32 = arith.constant 0 : i32
    %c0_i32_0 = arith.constant 0 : i32
    %c0_i32_1 = arith.constant 0 : i32
    return %c0_i32, %c0_i32_0 : i32, i32
  }
  func.func @transform_7(%arg0: i32) -> (i32, i32, i32) {
    %c0_i32 = arith.constant 0 : i32
    %c0_i32_0 = arith.constant 0 : i32
    %c0_i32_1 = arith.constant 0 : i32
    return %arg0, %c0_i32, %c0_i32_0 : i32, i32, i32
  }
}

</mosaic_0001>

<llo_original>
// kernel: tpu_custom_call.1
$region0: #{tpu_custom_call.1}
  #allocation0 [shape = 'u32[]', space=smem, size = 0x4, offset = 0x4, fixed_abs, tag = 'smem constant byte address 0x4 - core index']
  #allocation1 [shape = 'u32[144,128]{1,0:T(1,128)}', space=vmem, size = 0x12000, scoped, tag = 'internal scratch']
  %s0 = inlined_call_operand.vmem [shape: f32[2,32,256], index: 0, kind: input, shape index: {}]
  %s1 = inlined_call_operand.vmem [shape: f32[256,3], index: 1, kind: input, shape index: {}]
  %s2 = inlined_call_operand.vmem [shape: f32[3,256], index: 2, kind: input, shape index: {}]
  %s3 = inlined_call_operand.vmem [shape: f32[8,32], index: 3, kind: input, shape index: {}]
  %s4 = inlined_call_operand.vmem [shape: f32[8,1], index: 4, kind: input, shape index: {}]
  %s5 = inlined_call_operand.vmem [shape: f32[32,8], index: 5, kind: input, shape index: {}]
  %s6 = inlined_call_operand.vmem [shape: f32[32,1], index: 6, kind: input, shape index: {}]
  %s7 = inlined_call_operand.hbm [shape: f32[2,32,256], index: 7, kind: output, shape index: {}]
  %s8 = sld [smem:[#allocation0]]
  $region38: #{tpu_custom_call.1} parent=0
    _
  %s10 = ssub.s32 1, %s8
  %s11 = scalar_select 0, %s10, %s8
  $region1: #{tpu_custom_call.1} parent=0
    #allocation2 [shape = 'u8[65536]{0}', space=vmem, size = 0x10000, scoped, tag = 'output window, operand 0, single buffered']
    #allocation3 [shape = 's32[1]{0}', space=sflag, size = 0x4, scoped, tag = 'scoped memory for tpu_custom_call.1']
    %12 = vsyncpa [#allocation3], 0
    // Predicated region
    $region2: #{tpu_custom_call.1} parent=1 // pred_check
      _
    $region3: #{tpu_custom_call.1} parent=1 // pred_check_branch
      %14 = sbr.rel (0) target = $region5
    $region4: #{tpu_custom_call.1} parent=1 // pred_region
      _
    $region5: #{tpu_custom_call.1} parent=1 // pred_fallthru
      _
    // Predicated region
    $region6: #{tpu_custom_call.1} parent=1 // pred_check
      _
    $region7: #{tpu_custom_call.1} parent=1 // pred_check_branch
      %16 = sbr.rel (0) target = $region9
    $region8: #{tpu_custom_call.1} parent=1 // pred_region
      _
    $region9: #{tpu_custom_call.1} parent=1 // pred_fallthru
      _
    // Predicated region
    $region10: #{tpu_custom_call.1} parent=1 // pred_check
      _
    $region11: #{tpu_custom_call.1} parent=1 // pred_check_branch
      %18 = sbr.rel (0) target = $region13
    $region12: #{tpu_custom_call.1} parent=1 // pred_region
      _
    $region13: #{tpu_custom_call.1} parent=1 // pred_fallthru
      _
    // Predicated region
    $region14: #{tpu_custom_call.1} parent=1 // pred_check
      _
    $region15: #{tpu_custom_call.1} parent=1 // pred_check_branch
      %20 = sbr.rel (0) target = $region17
    $region16: #{tpu_custom_call.1} parent=1 // pred_region
      _
    $region17: #{tpu_custom_call.1} parent=1 // pred_fallthru
      _
    // Predicated region
    $region18: #{tpu_custom_call.1} parent=1 // pred_check
      _
    $region19: #{tpu_custom_call.1} parent=1 // pred_check_branch
      %22 = sbr.rel (0) target = $region21
    $region20: #{tpu_custom_call.1} parent=1 // pred_region
      _
    $region21: #{tpu_custom_call.1} parent=1 // pred_fallthru
      _
    // Predicated region
    $region22: #{tpu_custom_call.1} parent=1 // pred_check
      _
    $region23: #{tpu_custom_call.1} parent=1 // pred_check_branch
      %24 = sbr.rel (0) target = $region25
    $region24: #{tpu_custom_call.1} parent=1 // pred_region
      _
    $region25: #{tpu_custom_call.1} parent=1 // pred_fallthru
      _
    // Predicated region
    $region26: #{tpu_custom_call.1} parent=1 // pred_check
      _
    $region27: #{tpu_custom_call.1} parent=1 // pred_check_branch
      %26 = sbr.rel (0) target = $region29
    $region28: #{tpu_custom_call.1} parent=1 // pred_region
      _
    $region29: #{tpu_custom_call.1} parent=1 // pred_fallthru
      _
    %v27 = vld [vmem:[%s1] sm:$0xff]
    %v28 = vld [vmem:[%s1 + $0x8] sm:$0xff]
    %v29 = vld [vmem:[%s1 + $0x10] sm:$0xff]
    %v30 = vld [vmem:[%s1 + $0x18] sm:$0xff]
    %v31 = vld [vmem:[%s1 + $0x20] sm:$0xff]
    %v32 = vld [vmem:[%s1 + $0x28] sm:$0xff]
    %v33 = vld [vmem:[%s1 + $0x30] sm:$0xff]
    %v34 = vld [vmem:[%s1 + $0x38] sm:$0xff]
    %v35 = vld [vmem:[%s1 + $0x40] sm:$0xff]
    %v36 = vld [vmem:[%s1 + $0x48] sm:$0xff]
    %v37 = vld [vmem:[%s1 + $0x50] sm:$0xff]
    %v38 = vld [vmem:[%s1 + $0x58] sm:$0xff]
    %v39 = vld [vmem:[%s1 + $0x60] sm:$0xff]
    %v40 = vld [vmem:[%s1 + $0x68] sm:$0xff]
    %v41 = vld [vmem:[%s1 + $0x70] sm:$0xff]
    %v42 = vld [vmem:[%s1 + $0x78] sm:$0xff]
    %v43 = vld [vmem:[%s1 + $0x80] sm:$0xff]
    %v44 = vld [vmem:[%s1 + $0x88] sm:$0xff]
    %v45 = vld [vmem:[%s1 + $0x90] sm:$0xff]
    %v46 = vld [vmem:[%s1 + $0x98] sm:$0xff]
    %v47 = vld [vmem:[%s1 + $0xa0] sm:$0xff]
    %v48 = vld [vmem:[%s1 + $0xa8] sm:$0xff]
    %v49 = vld [vmem:[%s1 + $0xb0] sm:$0xff]
    %v50 = vld [vmem:[%s1 + $0xb8] sm:$0xff]
    %v51 = vld [vmem:[%s1 + $0xc0] sm:$0xff]
    %v52 = vld [vmem:[%s1 + $0xc8] sm:$0xff]
    %v53 = vld [vmem:[%s1 + $0xd0] sm:$0xff]
    %v54 = vld [vmem:[%s1 + $0xd8] sm:$0xff]
    %v55 = vld [vmem:[%s1 + $0xe0] sm:$0xff]
    %v56 = vld [vmem:[%s1 + $0xe8] sm:$0xff]
    %v57 = vld [vmem:[%s1 + $0xf0] sm:$0xff]
    %v58 = vld [vmem:[%s1 + $0xf8] sm:$0xff]
    %v59 = vld [vmem:[%s2] sm:$0x77]
    %v60 = vld [vmem:[%s3] sm:$0xff]
    %v61 = vld [vmem:[%s4] sm:$0xff]
    %v62 = vld [vmem:[%s5] sm:$0xff]
    %v63 = vld [vmem:[%s5 + $0x8] sm:$0xff]
    %v64 = vld [vmem:[%s5 + $0x10] sm:$0xff]
    %v65 = vld [vmem:[%s5 + $0x18] sm:$0xff]
    %v66 = vld [vmem:[%s6] sm:$0xff]
    %v67 = vld [vmem:[%s6 + $0x8] sm:$0xff]
    %v68 = vld [vmem:[%s6 + $0x10] sm:$0xff]
    %v69 = vld [vmem:[%s6 + $0x18] sm:$0xff]
    %v70 = vld [vmem:[%s0] sm:$0xff]
    %v71 = vld [vmem:[%s0 + $0x8] sm:$0xff]
    %v72 = vld [vmem:[%s0 + $0x10] sm:$0xff]
    %v73 = vld [vmem:[%s0 + $0x18] sm:$0xff]
    %v74 = vld [vmem:[%s0 + $0x20] sm:$0xff]
    %v75 = vld [vmem:[%s0 + $0x28] sm:$0xff]
    %v76 = vld [vmem:[%s0 + $0x30] sm:$0xff]
    %v77 = vld [vmem:[%s0 + $0x38] sm:$0xff]
    %78 = vmatprep.subr.mxu0 0.0
    %79 = vmatpush1.msra.mxu0 %v27
    %80 = vmatprep.subr.mxu0 0.0
    %81 = vmatpush1.msra.mxu0 %v28
    %82 = vmatprep.subr.mxu0 0.0
    %83 = vmatpush1.msra.mxu0 %v29
    %84 = vmatprep.subr.mxu0 0.0
    %85 = vmatpush1.msra.mxu0 %v30
    %86 = vmatprep.subr.mxu0 0.0
    %87 = vmatpush1.msra.mxu0 %v31
    %88 = vmatprep.subr.mxu0 0.0
    %89 = vmatpush1.msra.mxu0 %v32
    %90 = vmatprep.subr.mxu0 0.0
    %91 = vmatpush1.msra.mxu0 %v33
    %92 = vmatprep.subr.mxu0 0.0
    %93 = vmatpush1.msra.mxu0 %v34
    %94 = vmatprep.subr.mxu0 0.0
    %95 = vmatpush1.msra.mxu0 %v35
    %96 = vmatprep.subr.mxu0 0.0
    %97 = vmatpush1.msra.mxu0 %v36
    %98 = vmatprep.subr.mxu0 0.0
    %99 = vmatpush1.msra.mxu0 %v37
    %100 = vmatprep.subr.mxu0 0.0
    %101 = vmatpush1.msra.mxu0 %v38
    %102 = vmatprep.subr.mxu0 0.0
    %103 = vmatpush1.msra.mxu0 %v39
    %104 = vmatprep.subr.mxu0 0.0
    %105 = vmatpush1.msra.mxu0 %v40
    %106 = vmatprep.subr.mxu0 0.0
    %107 = vmatpush1.msra.mxu0 %v41
    %108 = vmatprep.subr.mxu0 0.0
    %109 = vmatpush1.msra.mxu0 %v42
    %110 = vmatprep.subr.mxu0 0.0
    %111 = vmatpush1.msra.mxu0 %v43
    %112 = vmatprep.subr.mxu0 0.0
    %113 = vmatpush1.msra.mxu0 %v44
    %114 = vmatprep.subr.mxu0 0.0
    %115 = vmatpush1.msra.mxu0 %v45
    %116 = vmatprep.subr.mxu0 0.0
    %117 = vmatpush1.msra.mxu0 %v46
    %118 = vmatprep.subr.mxu0 0.0
    %119 = vmatpush1.msra.mxu0 %v47
    %120 = vmatprep.subr.mxu0 0.0
    %121 = vmatpush1.msra.mxu0 %v48
    %122 = vmatprep.subr.mxu0 0.0
    %123 = vmatpush1.msra.mxu0 %v49
    %124 = vmatprep.subr.mxu0 0.0
    %125 = vmatpush1.msra.mxu0 %v50
    %126 = vmatprep.subr.mxu0 0.0
    %127 = vmatpush1.msra.mxu0 %v51
    %128 = vmatprep.subr.mxu0 0.0
    %129 = vmatpush1.msra.mxu0 %v52
    %130 = vmatprep.subr.mxu0 0.0
    %131 = vmatpush1.msra.mxu0 %v53
    %132 = vmatprep.subr.mxu0 0.0
    %133 = vmatpush1.msra.mxu0 %v54
    %134 = vmatprep.subr.mxu0 0.0
    %135 = vmatpush1.msra.mxu0 %v55
    %136 = vmatprep.subr.mxu0 0.0
    %137 = vmatpush1.msra.mxu0 %v56
    %138 = vmatprep.subr.mxu0 0.0
    %139 = vmatpush1.msra.mxu0 %v57
    %140 = vmatprep.subr.mxu0 0.0
    %141 = vmatpush1.msra.mxu0 %v58
    %142 = vmatprep.mubr.f32.mxu0 %v71
    %143 = vmatmul.mubr.f32.gmra.mrb[0].mxu0 %v70
    %v144 = vpop.f32.mrb[0].mxu0
    %v145 = vadd.f32 0.0, %v144
    %v146 = vpop.f32.mrb[0].mxu0
    %147 = vmatprep.mubr.f32.mxu0 %v73
    %148 = vmatmul.mubr.f32.gmra.mrb[0].mxu0 %v72
    %v149 = vpop.f32.mrb[0].mxu0
    %v150 = vadd.f32 0.0, %v149
    %v151 = vpop.f32.mrb[0].mxu0
    %152 = vmatprep.mubr.f32.mxu0 %v75
    %153 = vmatmul.mubr.f32.gmra.mrb[0].mxu0 %v74
    %v154 = vpop.f32.mrb[0].mxu0
    %v155 = vadd.f32 0.0, %v154
    %v156 = vpop.f32.mrb[0].mxu0
    %157 = vmatprep.mubr.f32.mxu0 %v77
    %158 = vmatmul.mubr.f32.gmra.mrb[0].mxu0 %v76
    %v159 = vpop.f32.mrb[0].mxu0
    %v160 = vadd.f32 0.0, %v159
    %v161 = vpop.f32.mrb[0].mxu0
    %162 = vdwg.mxu0
    %164 = vset.pattern.permute.xlu0 0
    %165 = vperm.xlu0 %164, %v61
    %v166 = vpop.permute.xlu0 %165
    %vm168 = vcmask 261120
    %v170 = vsel %vm168, %v60, 0
    %172 = vmatprep.subr.mxu0 0.0
    %173 = vmatpush1.msra.mxu0 %v145
    %174 = vmatprep.subr.mxu0 0.0
    %175 = vmatpush1.msra.mxu0 %v150
    %176 = vmatprep.subr.mxu0 0.0
    %177 = vmatpush1.msra.mxu0 %v155
    %178 = vmatprep.subr.mxu0 0.0
    %179 = vmatpush1.msra.mxu0 %v160
    %180 = vmatprep.subr.mxu0 0.0
    %181 = vmatpush1.msra.mxu0 0.0
    %182 = vmatprep.subr.mxu0 0.0
    %183 = vmatpush1.msra.mxu0 0.0
    %184 = vmatprep.subr.mxu0 0.0
    %185 = vmatpush1.msra.mxu0 0.0
    %186 = vmatprep.subr.mxu0 0.0
    %187 = vmatpush1.msra.mxu0 0.0
    %188 = vmatprep.subr.mxu0 0.0
    %189 = vmatpush1.msra.mxu0 0.0
    %190 = vmatprep.subr.mxu0 0.0
    %191 = vmatpush1.msra.mxu0 0.0
    %192 = vmatprep.subr.mxu0 0.0
    %193 = vmatpush1.msra.mxu0 0.0
    %194 = vmatprep.subr.mxu0 0.0
    %195 = vmatpush1.msra.mxu0 0.0
    %196 = vmatprep.subr.mxu0 0.0
    %197 = vmatpush1.msra.mxu0 0.0
    %198 = vmatprep.subr.mxu0 0.0
    %199 = vmatpush1.msra.mxu0 0.0
    %200 = vmatprep.subr.mxu0 0.0
    %201 = vmatpush1.msra.mxu0 0.0
    %202 = vmatprep.subr.mxu0 0.0
    %203 = vmatpush1.msra.mxu0 0.0
    %204 = vmatprep.subr.mxu0 0.0
    %205 = vmatpush1.msra.mxu0 0.0
    %206 = vmatprep.subr.mxu0 0.0
    %207 = vmatpush1.msra.mxu0 0.0
    %208 = vmatprep.subr.mxu0 0.0
    %209 = vmatpush1.msra.mxu0 0.0
    %210 = vmatprep.subr.mxu0 0.0
    %211 = vmatpush1.msra.mxu0 0.0
    %212 = vmatprep.subr.mxu0 0.0
    %213 = vmatpush1.msra.mxu0 0.0
    %214 = vmatprep.subr.mxu0 0.0
    %215 = vmatpush1.msra.mxu0 0.0
    %216 = vmatprep.subr.mxu0 0.0
    %217 = vmatpush1.msra.mxu0 0.0
    %218 = vmatprep.subr.mxu0 0.0
    %219 = vmatpush1.msra.mxu0 0.0
    %220 = vmatprep.subr.mxu0 0.0
    %221 = vmatpush1.msra.mxu0 0.0
    %222 = vmatprep.subr.mxu0 0.0
    %223 = vmatpush1.msra.mxu0 0.0
    %224 = vmatprep.subr.mxu0 0.0
    %225 = vmatpush1.msra.mxu0 0.0
    %226 = vmatprep.subr.mxu0 0.0
    %227 = vmatpush1.msra.mxu0 0.0
    %228 = vmatprep.subr.mxu0 0.0
    %229 = vmatpush1.msra.mxu0 0.0
    %230 = vmatprep.subr.mxu0 0.0
    %231 = vmatpush1.msra.mxu0 0.0
    %232 = vmatprep.subr.mxu0 0.0
    %233 = vmatpush1.msra.mxu0 0.0
    %234 = vmatprep.subr.mxu0 0.0
    %235 = vmatpush1.msra.mxu0 0.0
    %236 = vmatprep.mubr.f32.mxu0 0.0
    %237 = vmatmul.mubr.f32.gmra.mrb[0].mxu0 %v170
    %v238 = vpop.f32.mrb[0].mxu0
    %v239 = vadd.f32 %v166, %v238
    %v240 = vpop.f32.mrb[0].mxu0
    %241 = vdwg.mxu0
    %v242 = vmax.f32 %v239, 0.0
    %244 = vset.pattern.permute.xlu0 0
    %245 = vperm.xlu0 %244, %v66
    %v246 = vpop.permute.xlu0 %245
    %249 = vset.pattern.permute.xlu0 0
    %250 = vperm.xlu0 %249, %v67
    %v251 = vpop.permute.xlu0 %250
    %254 = vset.pattern.permute.xlu0 0
    %255 = vperm.xlu0 %254, %v68
    %v256 = vpop.permute.xlu0 %255
    %259 = vset.pattern.permute.xlu0 0
    %260 = vperm.xlu0 %259, %v69
    %v261 = vpop.permute.xlu0 %260
    %vm263 = vcmask 64512
    %v265 = vsel %vm263, %v62, 0
    %v268 = vsel %vm263, %v63, 0
    %v271 = vsel %vm263, %v64, 0
    %v274 = vsel %vm263, %v65, 0
    %276 = vmatprep.subr.mxu0 0.0
    %277 = vmatpush1.msra.mxu0 %v242
    %278 = vmatprep.subr.mxu0 0.0
    %279 = vmatpush1.msra.mxu0 0.0
    %280 = vmatprep.subr.mxu0 0.0
    %281 = vmatpush1.msra.mxu0 0.0
    %282 = vmatprep.subr.mxu0 0.0
    %283 = vmatpush1.msra.mxu0 0.0
    %284 = vmatprep.subr.mxu0 0.0
    %285 = vmatpush1.msra.mxu0 0.0
    %286 = vmatprep.subr.mxu0 0.0
    %287 = vmatpush1.msra.mxu0 0.0
    %288 = vmatprep.subr.mxu0 0.0
    %289 = vmatpush1.msra.mxu0 0.0
    %290 = vmatprep.subr.mxu0 0.0
    %291 = vmatpush1.msra.mxu0 0.0
    %292 = vmatprep.subr.mxu0 0.0
    %293 = vmatpush1.msra.mxu0 0.0
    %294 = vmatprep.subr.mxu0 0.0
    %295 = vmatpush1.msra.mxu0 0.0
    %296 = vmatprep.subr.mxu0 0.0
    %297 = vmatpush1.msra.mxu0 0.0
    %298 = vmatprep.subr.mxu0 0.0
    %299 = vmatpush1.msra.mxu0 0.0
    %300 = vmatprep.subr.mxu0 0.0
    %301 = vmatpush1.msra.mxu0 0.0
    %302 = vmatprep.subr.mxu0 0.0
    %303 = vmatpush1.msra.mxu0 0.0
    %304 = vmatprep.subr.mxu0 0.0
    %305 = vmatpush1.msra.mxu0 0.0
    %306 = vmatprep.subr.mxu0 0.0
    %307 = vmatpush1.msra.mxu0 0.0
    %308 = vmatprep.subr.mxu0 0.0
    %309 = vmatpush1.msra.mxu0 0.0
    %310 = vmatprep.subr.mxu0 0.0
    %311 = vmatpush1.msra.mxu0 0.0
    %312 = vmatprep.subr.mxu0 0.0
    %313 = vmatpush1.msra.mxu0 0.0
    %314 = vmatprep.subr.mxu0 0.0
    %315 = vmatpush1.msra.mxu0 0.0
    %316 = vmatprep.subr.mxu0 0.0
    %317 = vmatpush1.msra.mxu0 0.0
    %318 = vmatprep.subr.mxu0 0.0
    %319 = vmatpush1.msra.mxu0 0.0
    %320 = vmatprep.subr.mxu0 0.0
    %321 = vmatpush1.msra.mxu0 0.0
    %322 = vmatprep.subr.mxu0 0.0
    %323 = vmatpush1.msra.mxu0 0.0
    %324 = vmatprep.subr.mxu0 0.0
    %325 = vmatpush1.msra.mxu0 0.0
    %326 = vmatprep.subr.mxu0 0.0
    %327 = vmatpush1.msra.mxu0 0.0
    %328 = vmatprep.subr.mxu0 0.0
    %329 = vmatpush1.msra.mxu0 0.0
    %330 = vmatprep.subr.mxu0 0.0
    %331 = vmatpush1.msra.mxu0 0.0
    %332 = vmatprep.subr.mxu0 0.0
    %333 = vmatpush1.msra.mxu0 0.0
    %334 = vmatprep.subr.mxu0 0.0
    %335 = vmatpush1.msra.mxu0 0.0
    %336 = vmatprep.subr.mxu0 0.0
    %337 = vmatpush1.msra.mxu0 0.0
    %338 = vmatprep.subr.mxu0 0.0
    %339 = vmatpush1.msra.mxu0 0.0
    %340 = vmatprep.mubr.f32.mxu0 0.0
    %341 = vmatmul.mubr.f32.gmra.mrb[0].mxu0 %v265
    %v342 = vpop.f32.mrb[0].mxu0
    %v343 = vadd.f32 %v246, %v342
    %v344 = vpop.f32.mrb[0].mxu0
    %345 = vmatprep.mubr.f32.mxu0 0.0
    %346 = vmatmul.mubr.f32.gmra.mrb[0].mxu0 %v268
    %v347 = vpop.f32.mrb[0].mxu0
    %v348 = vadd.f32 %v251, %v347
    %v349 = vpop.f32.mrb[0].mxu0
    %350 = vmatprep.mubr.f32.mxu0 0.0
    %351 = vmatmul.mubr.f32.gmra.mrb[0].mxu0 %v271
    %v352 = vpop.f32.mrb[0].mxu0
    %v353 = vadd.f32 %v256, %v352
    %v354 = vpop.f32.mrb[0].mxu0
    %355 = vmatprep.mubr.f32.mxu0 0.0
    %356 = vmatmul.mubr.f32.gmra.mrb[0].mxu0 %v274
    %v357 = vpop.f32.mrb[0].mxu0
    %v358 = vadd.f32 %v261, %v357
    %v359 = vpop.f32.mrb[0].mxu0
    %360 = vdwg.mxu0
    %v361 = vadd.f32 %v343, 3.0
    %v362 = vadd.f32 %v348, 3.0
    %v363 = vadd.f32 %v353, 3.0
    %v364 = vadd.f32 %v358, 3.0
    %v365 = vrcp.pop 6.0
    %v366 = vmul.f32 %v361, %v365
    %v367 = vmul.f32 %v362, %v365
    %v368 = vmul.f32 %v363, %v365
    %v369 = vmul.f32 %v364, %v365
    %v370 = vmax.f32 %v366, 0.0
    %v371 = vmax.f32 %v367, 0.0
    %v372 = vmax.f32 %v368, 0.0
    %v373 = vmax.f32 %v369, 0.0
    %v374 = vmin.f32 %v370, 1.0
    %v375 = vmin.f32 %v371, 1.0
    %v376 = vmin.f32 %v372, 1.0
    %v377 = vmin.f32 %v373, 1.0
    %v379 = vcombine.high %v59, %v59
    %vm380 = vcmask 23552
    %v382 = vsel %vm380, %v374, 0
    %v385 = vsel %vm380, %v375, 0
    %v388 = vsel %vm380, %v376, 0
    %v391 = vsel %vm380, %v377, 0
    %vm393 = vcmask 1042432
    %v394 = vsel %vm393, %v59, 0
    %v396 = vsel %vm393, %v379, 0
    %398 = vmatprep.subr.mxu0 %v396
    %399 = vmatpush1.msra.mxu0 %v394
    %400 = vmatprep.subr.mxu0 0.0
    %401 = vmatpush1.msra.mxu0 0.0
    %402 = vmatprep.subr.mxu0 0.0
    %403 = vmatpush1.msra.mxu0 0.0
    %404 = vmatprep.subr.mxu0 0.0
    %405 = vmatpush1.msra.mxu0 0.0
    %406 = vmatprep.subr.mxu0 0.0
    %407 = vmatpush1.msra.mxu0 0.0
    %408 = vmatprep.subr.mxu0 0.0
    %409 = vmatpush1.msra.mxu0 0.0
    %410 = vmatprep.subr.mxu0 0.0
    %411 = vmatpush1.msra.mxu0 0.0
    %412 = vmatprep.subr.mxu0 0.0
    %413 = vmatpush1.msra.mxu0 0.0
    %414 = vmatprep.subr.mxu0 0.0
    %415 = vmatpush1.msra.mxu0 0.0
    %416 = vmatprep.subr.mxu0 0.0
    %417 = vmatpush1.msra.mxu0 0.0
    %418 = vmatprep.subr.mxu0 0.0
    %419 = vmatpush1.msra.mxu0 0.0
    %420 = vmatprep.subr.mxu0 0.0
    %421 = vmatpush1.msra.mxu0 0.0
    %422 = vmatprep.subr.mxu0 0.0
    %423 = vmatpush1.msra.mxu0 0.0
    %424 = vmatprep.subr.mxu0 0.0
    %425 = vmatpush1.msra.mxu0 0.0
    %426 = vmatprep.subr.mxu0 0.0
    %427 = vmatpush1.msra.mxu0 0.0
    %428 = vmatprep.subr.mxu0 0.0
    %429 = vmatpush1.msra.mxu0 0.0
    %430 = vmatprep.subr.mxu0 0.0
    %431 = vmatpush1.msra.mxu0 0.0
    %432 = vmatprep.subr.mxu0 0.0
    %433 = vmatpush1.msra.mxu0 0.0
    %434 = vmatprep.subr.mxu0 0.0
    %435 = vmatpush1.msra.mxu0 0.0
    %436 = vmatprep.subr.mxu0 0.0
    %437 = vmatpush1.msra.mxu0 0.0
    %438 = vmatprep.subr.mxu0 0.0
    %439 = vmatpush1.msra.mxu0 0.0
    %440 = vmatprep.subr.mxu0 0.0
    %441 = vmatpush1.msra.mxu0 0.0
    %442 = vmatprep.subr.mxu0 0.0
    %443 = vmatpush1.msra.mxu0 0.0
    %444 = vmatprep.subr.mxu0 0.0
    %445 = vmatpush1.msra.mxu0 0.0
    %446 = vmatprep.subr.mxu0 0.0
    %447 = vmatpush1.msra.mxu0 0.0
    %448 = vmatprep.subr.mxu0 0.0
    %449 = vmatpush1.msra.mxu0 0.0
    %450 = vmatprep.subr.mxu0 0.0
    %451 = vmatpush1.msra.mxu0 0.0
    %452 = vmatprep.subr.mxu0 0.0
    %453 = vmatpush1.msra.mxu0 0.0
    %454 = vmatprep.subr.mxu0 0.0
    %455 = vmatpush1.msra.mxu0 0.0
    %456 = vmatprep.subr.mxu0 0.0
    %457 = vmatpush1.msra.mxu0 0.0
    %458 = vmatprep.subr.mxu0 0.0
    %459 = vmatpush1.msra.mxu0 0.0
    %460 = vmatprep.subr.mxu0 0.0
    %461 = vmatpush1.msra.mxu0 0.0
    %462 = vmatprep.mubr.f32.mxu0 0.0
    %463 = vmatmul.mubr.f32.gmra.mrb[0].mxu0 %v382
    %v464 = vpop.f32.mrb[0].mxu0
    %v465 = vadd.f32 0.0, %v464
    %v466 = vpop.f32.mrb[0].mxu0
    %v467 = vadd.f32 0.0, %v466
    %468 = vmatprep.mubr.f32.mxu0 0.0
    %469 = vmatmul.mubr.f32.gmra.mrb[0].mxu0 %v385
    %v470 = vpop.f32.mrb[0].mxu0
    %v471 = vadd.f32 0.0, %v470
    %v472 = vpop.f32.mrb[0].mxu0
    %v473 = vadd.f32 0.0, %v472
    %474 = vmatprep.mubr.f32.mxu0 0.0
    %475 = vmatmul.mubr.f32.gmra.mrb[0].mxu0 %v388
    %v476 = vpop.f32.mrb[0].mxu0
    %v477 = vadd.f32 0.0, %v476
    %v478 = vpop.f32.mrb[0].mxu0
    %v479 = vadd.f32 0.0, %v478
    %480 = vmatprep.mubr.f32.mxu0 0.0
    %481 = vmatmul.mubr.f32.gmra.mrb[0].mxu0 %v391
    %v482 = vpop.f32.mrb[0].mxu0
    %v483 = vadd.f32 0.0, %v482
    %v484 = vpop.f32.mrb[0].mxu0
    %v485 = vadd.f32 0.0, %v484
    %486 = vdwg.mxu0
    %v487 = vmul.f32 %v70, %v465
    %v488 = vmul.f32 %v71, %v467
    %v489 = vmul.f32 %v72, %v471
    %v490 = vmul.f32 %v73, %v473
    %v491 = vmul.f32 %v74, %v477
    %v492 = vmul.f32 %v75, %v479
    %v493 = vmul.f32 %v76, %v483
    %v494 = vmul.f32 %v77, %v485
    %495 = vst [vmem:[#allocation2] sm:$0xff] %v487
    %496 = vst [vmem:[#allocation2 + $0x8] sm:$0xff] %v488
    %497 = vst [vmem:[#allocation2 + $0x10] sm:$0xff] %v489
    %498 = vst [vmem:[#allocation2 + $0x18] sm:$0xff] %v490
    %499 = vst [vmem:[#allocation2 + $0x20] sm:$0xff] %v491
    %500 = vst [vmem:[#allocation2 + $0x28] sm:$0xff] %v492
    %501 = vst [vmem:[#allocation2 + $0x30] sm:$0xff] %v493
    %502 = vst [vmem:[#allocation2 + $0x38] sm:$0xff] %v494
    %s503 = scalar_lea.vmem %s0, 64
    %v504 = vld [vmem:[%s503] sm:$0xff]
    %v505 = vld [vmem:[%s503 + $0x8] sm:$0xff]
    %v506 = vld [vmem:[%s503 + $0x10] sm:$0xff]
    %v507 = vld [vmem:[%s503 + $0x18] sm:$0xff]
    %v508 = vld [vmem:[%s503 + $0x20] sm:$0xff]
    %v509 = vld [vmem:[%s503 + $0x28] sm:$0xff]
    %v510 = vld [vmem:[%s503 + $0x30] sm:$0xff]
    %v511 = vld [vmem:[%s503 + $0x38] sm:$0xff]
    %512 = vmatprep.subr.mxu0 0.0
    %513 = vmatpush1.msra.mxu0 %v27
    %514 = vmatprep.subr.mxu0 0.0
    %515 = vmatpush1.msra.mxu0 %v28
    %516 = vmatprep.subr.mxu0 0.0
    %517 = vmatpush1.msra.mxu0 %v29
    %518 = vmatprep.subr.mxu0 0.0
    %519 = vmatpush1.msra.mxu0 %v30
    %520 = vmatprep.subr.mxu0 0.0
    %521 = vmatpush1.msra.mxu0 %v31
    %522 = vmatprep.subr.mxu0 0.0
    %523 = vmatpush1.msra.mxu0 %v32
    %524 = vmatprep.subr.mxu0 0.0
    %525 = vmatpush1.msra.mxu0 %v33
    %526 = vmatprep.subr.mxu0 0.0
    %527 = vmatpush1.msra.mxu0 %v34
    %528 = vmatprep.subr.mxu0 0.0
    %529 = vmatpush1.msra.mxu0 %v35
    %530 = vmatprep.subr.mxu0 0.0
    %531 = vmatpush1.msra.mxu0 %v36
    %532 = vmatprep.subr.mxu0 0.0
    %533 = vmatpush1.msra.mxu0 %v37
    %534 = vmatprep.subr.mxu0 0.0
    %535 = vmatpush1.msra.mxu0 %v38
    %536 = vmatprep.subr.mxu0 0.0
    %537 = vmatpush1.msra.mxu0 %v39
    %538 = vmatprep.subr.mxu0 0.0
    %539 = vmatpush1.msra.mxu0 %v40
    %540 = vmatprep.subr.mxu0 0.0
    %541 = vmatpush1.msra.mxu0 %v41
    %542 = vmatprep.subr.mxu0 0.0
    %543 = vmatpush1.msra.mxu0 %v42
    %544 = vmatprep.subr.mxu0 0.0
    %545 = vmatpush1.msra.mxu0 %v43
    %546 = vmatprep.subr.mxu0 0.0
    %547 = vmatpush1.msra.mxu0 %v44
    %548 = vmatprep.subr.mxu0 0.0
    %549 = vmatpush1.msra.mxu0 %v45
    %550 = vmatprep.subr.mxu0 0.0
    %551 = vmatpush1.msra.mxu0 %v46
    %552 = vmatprep.subr.mxu0 0.0
    %553 = vmatpush1.msra.mxu0 %v47
    %554 = vmatprep.subr.mxu0 0.0
    %555 = vmatpush1.msra.mxu0 %v48
    %556 = vmatprep.subr.mxu0 0.0
    %557 = vmatpush1.msra.mxu0 %v49
    %558 = vmatprep.subr.mxu0 0.0
    %559 = vmatpush1.msra.mxu0 %v50
    %560 = vmatprep.subr.mxu0 0.0
    %561 = vmatpush1.msra.mxu0 %v51
    %562 = vmatprep.subr.mxu0 0.0
    %563 = vmatpush1.msra.mxu0 %v52
    %564 = vmatprep.subr.mxu0 0.0
    %565 = vmatpush1.msra.mxu0 %v53
    %566 = vmatprep.subr.mxu0 0.0
    %567 = vmatpush1.msra.mxu0 %v54
    %568 = vmatprep.subr.mxu0 0.0
    %569 = vmatpush1.msra.mxu0 %v55
    %570 = vmatprep.subr.mxu0 0.0
    %571 = vmatpush1.msra.mxu0 %v56
    %572 = vmatprep.subr.mxu0 0.0
    %573 = vmatpush1.msra.mxu0 %v57
    %574 = vmatprep.subr.mxu0 0.0
    %575 = vmatpush1.msra.mxu0 %v58
    %576 = vmatprep.mubr.f32.mxu0 %v505
    %577 = vmatmul.mubr.f32.gmra.mrb[0].mxu0 %v504
    %v578 = vpop.f32.mrb[0].mxu0
    %v579 = vadd.f32 0.0, %v578
    %v580 = vpop.f32.mrb[0].mxu0
    %581 = vmatprep.mubr.f32.mxu0 %v507
    %582 = vmatmul.mubr.f32.gmra.mrb[0].mxu0 %v506
    %v583 = vpop.f32.mrb[0].mxu0
    %v584 = vadd.f32 0.0, %v583
    %v585 = vpop.f32.mrb[0].mxu0
    %586 = vmatprep.mubr.f32.mxu0 %v509
    %587 = vmatmul.mubr.f32.gmra.mrb[0].mxu0 %v508
    %v588 = vpop.f32.mrb[0].mxu0
    %v589 = vadd.f32 0.0, %v588
    %v590 = vpop.f32.mrb[0].mxu0
    %591 = vmatprep.mubr.f32.mxu0 %v511
    %592 = vmatmul.mubr.f32.gmra.mrb[0].mxu0 %v510
    %v593 = vpop.f32.mrb[0].mxu0
    %v594 = vadd.f32 0.0, %v593
    %v595 = vpop.f32.mrb[0].mxu0
    %596 = vdwg.mxu0
    %597 = vmatprep.subr.mxu0 0.0
    %598 = vmatpush1.msra.mxu0 %v579
    %599 = vmatprep.subr.mxu0 0.0
    %600 = vmatpush1.msra.mxu0 %v584
    %601 = vmatprep.subr.mxu0 0.0
    %602 = vmatpush1.msra.mxu0 %v589
    %603 = vmatprep.subr.mxu0 0.0
    %604 = vmatpush1.msra.mxu0 %v594
    %605 = vmatprep.subr.mxu0 0.0
    %606 = vmatpush1.msra.mxu0 0.0
    %607 = vmatprep.subr.mxu0 0.0
    %608 = vmatpush1.msra.mxu0 0.0
    %609 = vmatprep.subr.mxu0 0.0
    %610 = vmatpush1.msra.mxu0 0.0
    %611 = vmatprep.subr.mxu0 0.0
    %612 = vmatpush1.msra.mxu0 0.0
    %613 = vmatprep.subr.mxu0 0.0
    %614 = vmatpush1.msra.mxu0 0.0
    %615 = vmatprep.subr.mxu0 0.0
    %616 = vmatpush1.msra.mxu0 0.0
    %617 = vmatprep.subr.mxu0 0.0
    %618 = vmatpush1.msra.mxu0 0.0
    %619 = vmatprep.subr.mxu0 0.0
    %620 = vmatpush1.msra.mxu0 0.0
    %621 = vmatprep.subr.mxu0 0.0
    %622 = vmatpush1.msra.mxu0 0.0
    %623 = vmatprep.subr.mxu0 0.0
    %624 = vmatpush1.msra.mxu0 0.0
    %625 = vmatprep.subr.mxu0 0.0
    %626 = vmatpush1.msra.mxu0 0.0
    %627 = vmatprep.subr.mxu0 0.0
    %628 = vmatpush1.msra.mxu0 0.0
    %629 = vmatprep.subr.mxu0 0.0
    %630 = vmatpush1.msra.mxu0 0.0
    %631 = vmatprep.subr.mxu0 0.0
    %632 = vmatpush1.msra.mxu0 0.0
    %633 = vmatprep.subr.mxu0 0.0
    %634 = vmatpush1.msra.mxu0 0.0
    %635 = vmatprep.subr.mxu0 0.0
    %636 = vmatpush1.msra.mxu0 0.0
    %637 = vmatprep.subr.mxu0 0.0
    %638 = vmatpush1.msra.mxu0 0.0
    %639 = vmatprep.subr.mxu0 0.0
    %640 = vmatpush1.msra.mxu0 0.0
    %641 = vmatprep.subr.mxu0 0.0
    %642 = vmatpush1.msra.mxu0 0.0
    %643 = vmatprep.subr.mxu0 0.0
    %644 = vmatpush1.msra.mxu0 0.0
    %645 = vmatprep.subr.mxu0 0.0
    %646 = vmatpush1.msra.mxu0 0.0
    %647 = vmatprep.subr.mxu0 0.0
    %648 = vmatpush1.msra.mxu0 0.0
    %649 = vmatprep.subr.mxu0 0.0
    %650 = vmatpush1.msra.mxu0 0.0
    %651 = vmatprep.subr.mxu0 0.0
    %652 = vmatpush1.msra.mxu0 0.0
    %653 = vmatprep.subr.mxu0 0.0
    %654 = vmatpush1.msra.mxu0 0.0
    %655 = vmatprep.subr.mxu0 0.0
    %656 = vmatpush1.msra.mxu0 0.0
    %657 = vmatprep.subr.mxu0 0.0
    %658 = vmatpush1.msra.mxu0 0.0
    %659 = vmatprep.subr.mxu0 0.0
    %660 = vmatpush1.msra.mxu0 0.0
    %661 = vmatprep.mubr.f32.mxu0 0.0
    %662 = vmatmul.mubr.f32.gmra.mrb[0].mxu0 %v170
    %v663 = vpop.f32.mrb[0].mxu0
    %v664 = vadd.f32 %v166, %v663
    %v665 = vpop.f32.mrb[0].mxu0
    %666 = vdwg.mxu0
    %v667 = vmax.f32 %v664, 0.0
    %668 = vmatprep.subr.mxu0 0.0
    %669 = vmatpush1.msra.mxu0 %v667
    %670 = vmatprep.subr.mxu0 0.0
    %671 = vmatpush1.msra.mxu0 0.0
    %672 = vmatprep.subr.mxu0 0.0
    %673 = vmatpush1.msra.mxu0 0.0
    %674 = vmatprep.subr.mxu0 0.0
    %675 = vmatpush1.msra.mxu0 0.0
    %676 = vmatprep.subr.mxu0 0.0
    %677 = vmatpush1.msra.mxu0 0.0
    %678 = vmatprep.subr.mxu0 0.0
    %679 = vmatpush1.msra.mxu0 0.0
    %680 = vmatprep.subr.mxu0 0.0
    %681 = vmatpush1.msra.mxu0 0.0
    %682 = vmatprep.subr.mxu0 0.0
    %683 = vmatpush1.msra.mxu0 0.0
    %684 = vmatprep.subr.mxu0 0.0
    %685 = vmatpush1.msra.mxu0 0.0
    %686 = vmatprep.subr.mxu0 0.0
    %687 = vmatpush1.msra.mxu0 0.0
    %688 = vmatprep.subr.mxu0 0.0
    %689 = vmatpush1.msra.mxu0 0.0
    %690 = vmatprep.subr.mxu0 0.0
    %691 = vmatpush1.msra.mxu0 0.0
    %692 = vmatprep.subr.mxu0 0.0
    %693 = vmatpush1.msra.mxu0 0.0
    %694 = vmatprep.subr.mxu0 0.0
    %695 = vmatpush1.msra.mxu0 0.0
    %696 = vmatprep.subr.mxu0 0.0
    %697 = vmatpush1.msra.mxu0 0.0
    %698 = vmatprep.subr.mxu0 0.0
    %699 = vmatpush1.msra.mxu0 0.0
    %700 = vmatprep.subr.mxu0 0.0
    %701 = vmatpush1.msra.mxu0 0.0
    %702 = vmatprep.subr.mxu0 0.0
    %703 = vmatpush1.msra.mxu0 0.0
    %704 = vmatprep.subr.mxu0 0.0
    %705 = vmatpush1.msra.mxu0 0.0
    %706 = vmatprep.subr.mxu0 0.0
    %707 = vmatpush1.msra.mxu0 0.0
    %708 = vmatprep.subr.mxu0 0.0
    %709 = vmatpush1.msra.mxu0 0.0
    %710 = vmatprep.subr.mxu0 0.0
    %711 = vmatpush1.msra.mxu0 0.0
    %712 = vmatprep.subr.mxu0 0.0
    %713 = vmatpush1.msra.mxu0 0.0
    %714 = vmatprep.subr.mxu0 0.0
    %715 = vmatpush1.msra.mxu0 0.0
    %716 = vmatprep.subr.mxu0 0.0
    %717 = vmatpush1.msra.mxu0 0.0
    %718 = vmatprep.subr.mxu0 0.0
    %719 = vmatpush1.msra.mxu0 0.0
    %720 = vmatprep.subr.mxu0 0.0
    %721 = vmatpush1.msra.mxu0 0.0
    %722 = vmatprep.subr.mxu0 0.0
    %723 = vmatpush1.msra.mxu0 0.0
    %724 = vmatprep.subr.mxu0 0.0
    %725 = vmatpush1.msra.mxu0 0.0
    %726 = vmatprep.subr.mxu0 0.0
    %727 = vmatpush1.msra.mxu0 0.0
    %728 = vmatprep.subr.mxu0 0.0
    %729 = vmatpush1.msra.mxu0 0.0
    %730 = vmatprep.subr.mxu0 0.0
    %731 = vmatpush1.msra.mxu0 0.0
    %732 = vmatprep.mubr.f32.mxu0 0.0
    %733 = vmatmul.mubr.f32.gmra.mrb[0].mxu0 %v265
    %v734 = vpop.f32.mrb[0].mxu0
    %v735 = vadd.f32 %v246, %v734
    %v736 = vpop.f32.mrb[0].mxu0
    %737 = vmatprep.mubr.f32.mxu0 0.0
    %738 = vmatmul.mubr.f32.gmra.mrb[0].mxu0 %v268
    %v739 = vpop.f32.mrb[0].mxu0
    %v740 = vadd.f32 %v251, %v739
    %v741 = vpop.f32.mrb[0].mxu0
    %742 = vmatprep.mubr.f32.mxu0 0.0
    %743 = vmatmul.mubr.f32.gmra.mrb[0].mxu0 %v271
    %v744 = vpop.f32.mrb[0].mxu0
    %v745 = vadd.f32 %v256, %v744
    %v746 = vpop.f32.mrb[0].mxu0
    %747 = vmatprep.mubr.f32.mxu0 0.0
    %748 = vmatmul.mubr.f32.gmra.mrb[0].mxu0 %v274
    %v749 = vpop.f32.mrb[0].mxu0
    %v750 = vadd.f32 %v261, %v749
    %v751 = vpop.f32.mrb[0].mxu0
    %752 = vdwg.mxu0
    %v753 = vadd.f32 %v735, 3.0
    %v754 = vadd.f32 %v740, 3.0
    %v755 = vadd.f32 %v745, 3.0
    %v756 = vadd.f32 %v750, 3.0
    %v757 = vmul.f32 %v753, %v365
    %v758 = vmul.f32 %v754, %v365
    %v759 = vmul.f32 %v755, %v365
    %v760 = vmul.f32 %v756, %v365
    %v761 = vmax.f32 %v757, 0.0
    %v762 = vmax.f32 %v758, 0.0
    %v763 = vmax.f32 %v759, 0.0
    %v764 = vmax.f32 %v760, 0.0
    %v765 = vmin.f32 %v761, 1.0
    %v766 = vmin.f32 %v762, 1.0
    %v767 = vmin.f32 %v763, 1.0
    %v768 = vmin.f32 %v764, 1.0
    %v770 = vsel %vm380, %v765, 0
    %v773 = vsel %vm380, %v766, 0
    %v776 = vsel %vm380, %v767, 0
    %v779 = vsel %vm380, %v768, 0
    %781 = vmatprep.subr.mxu0 %v396
    %782 = vmatpush1.msra.mxu0 %v394
    %783 = vmatprep.subr.mxu0 0.0
    %784 = vmatpush1.msra.mxu0 0.0
    %785 = vmatprep.subr.mxu0 0.0
    %786 = vmatpush1.msra.mxu0 0.0
    %787 = vmatprep.subr.mxu0 0.0
    %788 = vmatpush1.msra.mxu0 0.0
    %789 = vmatprep.subr.mxu0 0.0
    %790 = vmatpush1.msra.mxu0 0.0
    %791 = vmatprep.subr.mxu0 0.0
    %792 = vmatpush1.msra.mxu0 0.0
    %793 = vmatprep.subr.mxu0 0.0
    %794 = vmatpush1.msra.mxu0 0.0
    %795 = vmatprep.subr.mxu0 0.0
    %796 = vmatpush1.msra.mxu0 0.0
    %797 = vmatprep.subr.mxu0 0.0
    %798 = vmatpush1.msra.mxu0 0.0
    %799 = vmatprep.subr.mxu0 0.0
    %800 = vmatpush1.msra.mxu0 0.0
    %801 = vmatprep.subr.mxu0 0.0
    %802 = vmatpush1.msra.mxu0 0.0
    %803 = vmatprep.subr.mxu0 0.0
    %804 = vmatpush1.msra.mxu0 0.0
    %805 = vmatprep.subr.mxu0 0.0
    %806 = vmatpush1.msra.mxu0 0.0
    %807 = vmatprep.subr.mxu0 0.0
    %808 = vmatpush1.msra.mxu0 0.0
    %809 = vmatprep.subr.mxu0 0.0
    %810 = vmatpush1.msra.mxu0 0.0
    %811 = vmatprep.subr.mxu0 0.0
    %812 = vmatpush1.msra.mxu0 0.0
    %813 = vmatprep.subr.mxu0 0.0
    %814 = vmatpush1.msra.mxu0 0.0
    %815 = vmatprep.subr.mxu0 0.0
    %816 = vmatpush1.msra.mxu0 0.0
    %817 = vmatprep.subr.mxu0 0.0
    %818 = vmatpush1.msra.mxu0 0.0
    %819 = vmatprep.subr.mxu0 0.0
    %820 = vmatpush1.msra.mxu0 0.0
    %821 = vmatprep.subr.mxu0 0.0
    %822 = vmatpush1.msra.mxu0 0.0
    %823 = vmatprep.subr.mxu0 0.0
    %824 = vmatpush1.msra.mxu0 0.0
    %825 = vmatprep.subr.mxu0 0.0
    %826 = vmatpush1.msra.mxu0 0.0
    %827 = vmatprep.subr.mxu0 0.0
    %828 = vmatpush1.msra.mxu0 0.0
    %829 = vmatprep.subr.mxu0 0.0
    %830 = vmatpush1.msra.mxu0 0.0
    %831 = vmatprep.subr.mxu0 0.0
    %832 = vmatpush1.msra.mxu0 0.0
    %833 = vmatprep.subr.mxu0 0.0
    %834 = vmatpush1.msra.mxu0 0.0
    %835 = vmatprep.subr.mxu0 0.0
    %836 = vmatpush1.msra.mxu0 0.0
    %837 = vmatprep.subr.mxu0 0.0
    %838 = vmatpush1.msra.mxu0 0.0
    %839 = vmatprep.subr.mxu0 0.0
    %840 = vmatpush1.msra.mxu0 0.0
    %841 = vmatprep.subr.mxu0 0.0
    %842 = vmatpush1.msra.mxu0 0.0
    %843 = vmatprep.subr.mxu0 0.0
    %844 = vmatpush1.msra.mxu0 0.0
    %845 = vmatprep.mubr.f32.mxu0 0.0
    %846 = vmatmul.mubr.f32.gmra.mrb[0].mxu0 %v770
    %v847 = vpop.f32.mrb[0].mxu0
    %v848 = vadd.f32 0.0, %v847
    %v849 = vpop.f32.mrb[0].mxu0
    %v850 = vadd.f32 0.0, %v849
    %851 = vmatprep.mubr.f32.mxu0 0.0
    %852 = vmatmul.mubr.f32.gmra.mrb[0].mxu0 %v773
    %v853 = vpop.f32.mrb[0].mxu0
    %v854 = vadd.f32 0.0, %v853
    %v855 = vpop.f32.mrb[0].mxu0
    %v856 = vadd.f32 0.0, %v855
    %857 = vmatprep.mubr.f32.mxu0 0.0
    %858 = vmatmul.mubr.f32.gmra.mrb[0].mxu0 %v776
    %v859 = vpop.f32.mrb[0].mxu0
    %v860 = vadd.f32 0.0, %v859
    %v861 = vpop.f32.mrb[0].mxu0
    %v862 = vadd.f32 0.0, %v861
    %863 = vmatprep.mubr.f32.mxu0 0.0
    %864 = vmatmul.mubr.f32.gmra.mrb[0].mxu0 %v779
    %v865 = vpop.f32.mrb[0].mxu0
    %v866 = vadd.f32 0.0, %v865
    %v867 = vpop.f32.mrb[0].mxu0
    %v868 = vadd.f32 0.0, %v867
    %869 = vdwg.mxu0
    %v870 = vmul.f32 %v504, %v848
    %v871 = vmul.f32 %v505, %v850
    %v872 = vmul.f32 %v506, %v854
    %v873 = vmul.f32 %v507, %v856
    %v874 = vmul.f32 %v508, %v860
    %v875 = vmul.f32 %v509, %v862
    %v876 = vmul.f32 %v510, %v866
    %v877 = vmul.f32 %v511, %v868
    %s878 = scalar_lea.vmem [#allocation2], 64
    %879 = vst [vmem:[%s878] sm:$0xff] %v870
    %880 = vst [vmem:[%s878 + $0x8] sm:$0xff] %v871
    %881 = vst [vmem:[%s878 + $0x10] sm:$0xff] %v872
    %882 = vst [vmem:[%s878 + $0x18] sm:$0xff] %v873
    %883 = vst [vmem:[%s878 + $0x20] sm:$0xff] %v874
    %884 = vst [vmem:[%s878 + $0x28] sm:$0xff] %v875
    %885 = vst [vmem:[%s878 + $0x30] sm:$0xff] %v876
    %886 = vst [vmem:[%s878 + $0x38] sm:$0xff] %v877
    // Predicated region
    $region30: #{tpu_custom_call.1} parent=1 // pred_check
      _
    $region31: #{tpu_custom_call.1} parent=1 // pred_check_branch
      %888 = sbr.rel (0) target = $region33
    $region32: #{tpu_custom_call.1} parent=1 // pred_region
      %s890 = ssub.s32 2048, 2048
      %891 = vsyncadd [#allocation3], %s890
      %s892 = sshll.u32 [#allocation2], 4
      %s893 = int_to_ptr.vmem [resolvable:$true] %s892
      %898 = dma.vmem_to_hbm [thread:$0]  %s893, 2048, %s7, [#allocation3], 256, 256, 16
    $region33: #{tpu_custom_call.1} parent=1 // pred_fallthru
      _
    // Predicated region
    $region34: #{tpu_custom_call.1} parent=1 // pred_check
      _
    $region35: #{tpu_custom_call.1} parent=1 // pred_check_branch
      %900 = sbr.rel (0) target = $region37
    $region36: #{tpu_custom_call.1} parent=1 // pred_region
      %901 = dma.done [#allocation3], 2048
    $region37: #{tpu_custom_call.1} parent=1 // pred_fallthru
      _
    %902 = vsyncpa [#allocation3], 1

</llo_original>
